<compile_context>
chip_gen: v5e
topology: v5e:2x2
jax: 0.10.0
libtpu: 0.0.40
codegen_flags: <defaults>
</compile_context>

<pallas_src>
import jax
import jax.numpy as jnp
from jax.experimental import pallas as pl
from jax.experimental.pallas import tpu as pltpu

_LANES = 128  # lane width: output stores stay unmasked full-vreg writes


def _cdiv(a, b):
    return (a + b - 1) // b


def _round_up(x, m):
    return ((x + m - 1) // m) * m


def _make_cutoff_kernel(cutoff):
    # cutoff is a compile-time constant (mirrors the registered buffer).
    # If a traced/dynamic cutoff is ever needed, pass it as an SMEM scalar instead.
    c = float(cutoff)
    inv_c = 1.0 / c  # hoisted: one VPU mul per element instead of a divide chain

    def kernel(d_ref, o_ref):
        d = d_ref[...].astype(jnp.float32)
        r = d * inv_c
        poly = 1.0 - r * r
        poly = poly * poly * poly
        o_ref[...] = jnp.where(d < c, poly, 0.0).astype(o_ref.dtype)

    return kernel


def polynomial_cutoff(distances, cutoff=3.0, *, block_rows=4096):
    """Elementwise polynomial cutoff via Pallas. `distances` may be any rank/shape."""
    x = jnp.asarray(distances)
    if x.dtype == jnp.bfloat16:
        io_dtype = jnp.bfloat16        # keep bf16 I/O: halves HBM traffic
    else:
        io_dtype = jnp.float32
        x = x.astype(jnp.float32)

    orig_shape = x.shape
    flat = x.reshape(-1)               # contiguous reshape: no data movement
    total = flat.shape[0]
    if total == 0:
        return jnp.zeros(orig_shape, dtype=io_dtype)

    aligned = (total % _LANES) == 0
    if aligned:
        padded = total                 # zero-copy path
    else:
        # Minimal pad (< 128 extra elements); still one extra pass each way.
        padded = _round_up(total, _LANES)
        flat = jnp.pad(flat, (0, padded - total))

    rows = padded // _LANES
    d2 = flat.reshape(rows, _LANES)    # contiguous reshape: no data movement

    # --- block sizing -------------------------------------------------------
    align = 16 if io_dtype == jnp.bfloat16 else 8      # sublane alignment per dtype
    tm_max = max(align, (block_rows // align) * align)  # ~2 MiB f32 blocks by default
    in_bytes = rows * _LANES * jnp.dtype(io_dtype).itemsize

    if in_bytes <= (1 << 20):
        # Small input: one block, no grid-loop / split overhead.
        tm = min(tm_max, _round_up(rows, align))
    else:
        # Split into >= 2 roughly equal blocks so the "parallel" axis can shard
        # across v7x's two TensorCores; cap at tm_max to bound VMEM use.
        num_blocks = max(2, _cdiv(rows, tm_max))
        tm = min(tm_max, _round_up(_cdiv(rows, num_blocks), align))

    grid = (_cdiv(rows, tm),)          # ragged edge block is masked by Pallas

    out = pl.pallas_call(
        _make_cutoff_kernel(cutoff),
        out_shape=jax.ShapeDtypeStruct((rows, _LANES), io_dtype),
        grid_spec=pltpu.PrefetchScalarGridSpec(
            num_scalar_prefetch=0,
            grid=grid,
            in_specs=[pl.BlockSpec((tm, _LANES), lambda i: (i, 0))],
            out_specs=pl.BlockSpec((tm, _LANES), lambda i: (i, 0)),
        ),
        compiler_params=pltpu.CompilerParams(
            dimension_semantics=("parallel",)),
    )(d2)

    flat_out = out.reshape(-1)
    if not aligned:
        flat_out = flat_out[:total]
    return flat_out.reshape(orig_shape)


def _reference(distances, cutoff=3.0):
    # Mirrors the PyTorch module exactly (f32 math).
    d = jnp.asarray(distances, dtype=jnp.float32)
    cutoffs = (1.0 - (d / jnp.float32(cutoff)) ** 2) ** 3
    return cutoffs * (d < cutoff).astype(jnp.float32)


if __name__ == "__main__":
    key = jax.random.PRNGKey(0)

    # Main demo: pairwise distances (n_atoms, n_neighbors) in [0, 6).
    # 16*128 elements -> 128-aligned -> zero-copy (no pad, no slice) path.
    distances = jax.random.uniform(
        key, (16, 128), dtype=jnp.float32, minval=0.0, maxval=6.0)
    out = jax.block_until_ready(polynomial_cutoff(distances, cutoff=3.0))
    ref = _reference(distances, cutoff=3.0)
    assert out.shape == distances.shape and out.dtype == jnp.float32
    assert jnp.allclose(out, ref, atol=1e-5, rtol=1e-5)

    # Robustness: odd shapes, 1-D, and 0-D inputs (minimal-pad fallback path).
    k1, k2, k3, k4 = jax.random.split(key, 4)
    for shape, kk in (((5, 7, 13), k1), ((300,), k2), ((), k3)):
        d = jax.random.uniform(kk, shape, dtype=jnp.float32, minval=0.0, maxval=6.0)
        o = jax.block_until_ready(polynomial_cutoff(d, cutoff=3.0))
        r = _reference(d, cutoff=3.0)
        assert o.shape == shape and o.dtype == jnp.float32
        assert jnp.allclose(o, r, atol=1e-5, rtol=1e-5)

    # bf16 passthrough: bf16 in / bf16 out, f32 math inside the kernel.
    db = jax.random.uniform(
        k4, (8, 128), dtype=jnp.float32, minval=0.0, maxval=6.0).astype(jnp.bfloat16)
    ob = jax.block_until_ready(polynomial_cutoff(db, cutoff=3.0))
    rb = _reference(db, cutoff=3.0).astype(jnp.bfloat16)
    assert ob.shape == db.shape and ob.dtype == jnp.bfloat16
    assert jnp.allclose(ob.astype(jnp.float32), rb.astype(jnp.float32),
                        atol=2e-2, rtol=2e-2)

    print("KERNEL_OK")
</pallas_src>

<mosaic_0001>
module attributes {stable_mosaic.version = 11 : i64} {
  func.func @kernel(%arg0: i32, %arg1: memref<16x128xf32, #tpu.memory_space<vmem>>, %arg2: memref<16x128xf32, #tpu.memory_space<vmem>>) attributes {dimension_semantics = [#tpu.dimension_semantics<parallel>], iteration_bounds = array<i64: 1>, scalar_prefetch = 0 : i64, scratch_operands = 0 : i64, tpu.core_type = #tpu.core_type<tc>, window_params = [{transform_indices = @transform_0, window_bounds = array<i64: 16, 128>}, {transform_indices = @transform_1, window_bounds = array<i64: 16, 128>}]} {
    %c0 = arith.constant 0 : index
    %c0_0 = arith.constant 0 : index
    %0 = vector.load %arg1[%c0, %c0_0] : memref<16x128xf32, #tpu.memory_space<vmem>>, vector<16x128xf32>
    %cst = arith.constant 0.333333343 : f32
    %1 = vector.broadcast %cst : f32 to vector<16x128xf32>
    %2 = arith.mulf %0, %1 : vector<16x128xf32>
    %3 = arith.mulf %2, %2 : vector<16x128xf32>
    %cst_1 = arith.constant 1.000000e+00 : f32
    %4 = vector.broadcast %cst_1 : f32 to vector<16x128xf32>
    %5 = arith.subf %4, %3 : vector<16x128xf32>
    %6 = arith.mulf %5, %5 : vector<16x128xf32>
    %7 = arith.mulf %6, %5 : vector<16x128xf32>
    %cst_2 = arith.constant 3.000000e+00 : f32
    %8 = vector.broadcast %cst_2 : f32 to vector<16x128xf32>
    %9 = arith.cmpf olt, %0, %8 : vector<16x128xf32>
    %cst_3 = arith.constant 0.000000e+00 : f32
    %10 = vector.broadcast %cst_3 : f32 to vector<16x128xf32>
    %11 = arith.select %9, %7, %10 : vector<16x128xi1>, vector<16x128xf32>
    %c0_4 = arith.constant 0 : index
    %c0_5 = arith.constant 0 : index
    %12 = vector.load %arg2[%c0_4, %c0_5] : memref<16x128xf32, #tpu.memory_space<vmem>>, vector<16x128xf32>
    tpu.vector_store %arg2[%c0_4, %c0_5], %11 {strides = array<i32>} : memref<16x128xf32, #tpu.memory_space<vmem>>, vector<16x128xf32>,
    return
  }
  func.func @transform_0(%arg0: i32) -> (i32, i32) {
    %c0_i32 = arith.constant 0 : i32
    %c0_i32_0 = arith.constant 0 : i32
    return %arg0, %c0_i32 : i32, i32
  }
  func.func @transform_1(%arg0: i32) -> (i32, i32) {
    %c0_i32 = arith.constant 0 : i32
    %c0_i32_0 = arith.constant 0 : i32
    return %arg0, %c0_i32 : i32, i32
  }
}

</mosaic_0001>

<llo_original>
// kernel: tpu_custom_call.1
$region0: #{tpu_custom_call.1}
  #allocation0 [shape = 'u32[]', space=smem, size = 0x4, offset = 0x4, fixed_abs, tag = 'smem constant byte address 0x4 - core index']
  #allocation1 [shape = 'u32[72,128]{1,0:T(1,128)}', space=vmem, size = 0x9000, scoped, tag = 'internal scratch']
  %s0 = inlined_call_operand.hbm [shape: f32[16,128], index: 0, kind: input, shape index: {}]
  %s1 = inlined_call_operand.hbm [shape: f32[16,128], index: 1, kind: output, shape index: {}]
  %s2 = sld [smem:[#allocation0]]
  $region18: #{tpu_custom_call.1} parent=0
    _
  %s4 = ssub.s32 1, %s2
  %s5 = scalar_select 0, %s4, %s2
  $region1: #{tpu_custom_call.1} parent=0
    #allocation2 [shape = 'u8[8192]{0}', space=vmem, size = 0x2000, scoped, tag = 'input window, operand 0, single buffered']
    #allocation3 [shape = 's32[1]{0}', space=sflag, size = 0x4, scoped, tag = 'scoped memory for tpu_custom_call.1']
    #allocation4 [shape = 's32[1]{0}', space=sflag, size = 0x4, scoped, tag = 'scoped memory for tpu_custom_call.1']
    #allocation5 [shape = 'u8[8192]{0}', space=vmem, size = 0x2000, scoped, tag = 'output window, operand 0, single buffered']
    %6 = vsyncpa [#allocation3], 0
    %7 = vsyncpa [#allocation4], 0
    // Predicated region
    $region2: #{tpu_custom_call.1} parent=1 // pred_check
      _
    $region3: #{tpu_custom_call.1} parent=1 // pred_check_branch
      %9 = sbr.rel (0) target = $region5
    $region4: #{tpu_custom_call.1} parent=1 // pred_region
      %11 = vsyncadd [#allocation3], 0
      %s12 = sshll.u32 %s0, 4
      %s13 = int_to_ptr.hbm [resolvable:$true] %s12
      %s14 = sshll.u32 [#allocation2], 4
      %s15 = int_to_ptr.vmem [resolvable:$true] %s14
      %20 = dma.hbm_to_vmem [thread:$0]  %s13, 256, %s15, [#allocation3], 128, 128, 8
    $region5: #{tpu_custom_call.1} parent=1 // pred_fallthru
      _
    // Predicated region
    $region6: #{tpu_custom_call.1} parent=1 // pred_check
      _
    $region7: #{tpu_custom_call.1} parent=1 // pred_check_branch
      %22 = sbr.rel (0) target = $region9
    $region8: #{tpu_custom_call.1} parent=1 // pred_region
      %24 = dma.done [#allocation3], 256
    $region9: #{tpu_custom_call.1} parent=1 // pred_fallthru
      _
    %v25 = vld [vmem:[#allocation2] sm:$0xff]
    %v26 = vld [vmem:[#allocation2 + $0x8] sm:$0xff]
    %v27 = vmul.f32 %v25, 0.33333334
    %v28 = vmul.f32 %v26, 0.33333334
    %v29 = vmul.f32 %v27, %v27
    %v30 = vmul.f32 %v28, %v28
    %v31 = vsub.f32 1.0, %v29
    %v32 = vsub.f32 1.0, %v30
    %v33 = vmul.f32 %v31, %v31
    %v34 = vmul.f32 %v32, %v32
    %v35 = vmul.f32 %v33, %v31
    %v36 = vmul.f32 %v34, %v32
    %vm37 = vcmp.lt.f32.partialorder %v25, 3.0
    %vm38 = vcmp.lt.f32.partialorder %v26, 3.0
    %v39 = vsel %vm37, %v35, 0.0
    %v40 = vsel %vm38, %v36, 0.0
    %41 = vst [vmem:[#allocation5] sm:$0xff] %v39
    %42 = vst [vmem:[#allocation5 + $0x8] sm:$0xff] %v40
    // Predicated region
    $region10: #{tpu_custom_call.1} parent=1 // pred_check
      _
    $region11: #{tpu_custom_call.1} parent=1 // pred_check_branch
      %44 = sbr.rel (0) target = $region13
    $region12: #{tpu_custom_call.1} parent=1 // pred_region
      %46 = vsyncadd [#allocation4], 0
      %s47 = sshll.u32 [#allocation5], 4
      %s48 = int_to_ptr.vmem [resolvable:$true] %s47
      %s49 = sshll.u32 %s1, 4
      %s50 = int_to_ptr.hbm [resolvable:$true] %s49
      %55 = dma.vmem_to_hbm [thread:$0]  %s48, 256, %s50, [#allocation4], 128, 128, 8
    $region13: #{tpu_custom_call.1} parent=1 // pred_fallthru
      _
    // Predicated region
    $region14: #{tpu_custom_call.1} parent=1 // pred_check
      _
    $region15: #{tpu_custom_call.1} parent=1 // pred_check_branch
      %57 = sbr.rel (0) target = $region17
    $region16: #{tpu_custom_call.1} parent=1 // pred_region
      %59 = dma.done [#allocation4], 256
    $region17: #{tpu_custom_call.1} parent=1 // pred_fallthru
      _
    %60 = vsyncpa [#allocation3], 1
    %61 = vsyncpa [#allocation4], 1

</llo_original>
